<compile_context>
chip_gen: v7x
topology: tpu7x:2x2x1
jax: 0.10.0
libtpu: 0.0.40
codegen_flags: <defaults>
</compile_context>

<pallas_src>
import functools

import jax
import jax.numpy as jnp
from jax import lax
from jax.experimental import pallas as pl
from jax.experimental.pallas import tpu as pltpu

# Module constants (from pytorch_rnn_IIR.py)
BATCH = 1
HIDDEN = 3
INFEATURES = 1
OUTPUTS = 1
SEQ = 8  # sequence length of the example input

# Packed input slab: one (8, 128) f32 tile (= one vreg, one DMA).
SLAB_ROWS = 8
SLAB_LANES = 128

# Row assignments inside the slab.
ROW_X_ROW = 0    # [0, 0:S]        x as a (1, S) row
ROW_WIH_ROW = 1  # [1, 0:H]        w_ih[:, 0] as a (1, H) row
ROW_WFO_ROW = 2  # [2, 0:H]        w_fo[0, :] as a (1, H) row
ROW_WHH = 3      # [3:3+H, ...]    w_hh block rows (also hold the column copies)


def _slab_lanes(seq, hidden):
    """Lane offsets inside the packed slab (pure function of static shapes)."""
    lane_whh = 0                     # [3:3+H, 0:H]      w_hh      [j, k]
    lane_whh_t = hidden              # [3:3+H, H:2H]     w_hh^T    [k, j]
    lane_wih_col = 2 * hidden        # [3:3+H, 2H]       w_ih col  (H, 1)
    lane_wfo_col = 2 * hidden + 1    # [3:3+H, 2H+1]     w_fo col  (H, 1)
    lane_x_col = max(seq, 2 * hidden + 2)  # [0:S, lane]  x col    (S, 1)
    return lane_whh, lane_whh_t, lane_wih_col, lane_wfo_col, lane_x_col


def pack_inputs(x, w_ih, w_hh, w_fo):
    """Pack x + all weights (both orientations) into one (8,128) f32 slab."""
    seq = x.shape[0]
    h = w_hh.shape[0]
    lane_whh, lane_whh_t, lane_wih_col, lane_wfo_col, lane_x_col = _slab_lanes(seq, h)

    xf = x.reshape(seq).astype(jnp.float32)       # (S,)  (batch = infeatures = 1)
    wih = w_ih[:, 0].astype(jnp.float32)          # (H,)
    wfo = w_fo[0, :].astype(jnp.float32)          # (H,)
    whh = w_hh.astype(jnp.float32)                # (H, H)

    slab = jnp.zeros((SLAB_ROWS, SLAB_LANES), jnp.float32)
    slab = slab.at[ROW_X_ROW, 0:seq].set(xf)
    slab = slab.at[ROW_WIH_ROW, 0:h].set(wih)
    slab = slab.at[ROW_WFO_ROW, 0:h].set(wfo)
    slab = slab.at[ROW_WHH:ROW_WHH + h, lane_whh:lane_whh + h].set(whh)
    slab = slab.at[ROW_WHH:ROW_WHH + h, lane_whh_t:lane_whh_t + h].set(whh.T)
    slab = slab.at[ROW_WHH:ROW_WHH + h, lane_wih_col].set(wih)
    slab = slab.at[ROW_WHH:ROW_WHH + h, lane_wfo_col].set(wfo)
    slab = slab.at[0:seq, lane_x_col].set(xf)
    return slab


def rnn_kernel(packed_ref, out_ref, *, seq, hidden):
    H = hidden
    lane_whh, lane_whh_t, lane_wih_col, lane_wfo_col, lane_x_col = _slab_lanes(seq, H)

    # Static sub-tile views of the single packed VMEM slab (all loads, no
    # transposes or relayouts anywhere in the kernel).
    x_row = packed_ref[ROW_X_ROW:ROW_X_ROW + 1, 0:seq]                        # (1, S)
    w_ih_row = packed_ref[ROW_WIH_ROW:ROW_WIH_ROW + 1, 0:H]                   # (1, H)
    w_fo_row = packed_ref[ROW_WFO_ROW:ROW_WFO_ROW + 1, 0:H]                   # (1, H)
    w_hh = packed_ref[ROW_WHH:ROW_WHH + H, lane_whh:lane_whh + H]             # (H, H) [j,k]
    w_hh_t = packed_ref[ROW_WHH:ROW_WHH + H, lane_whh_t:lane_whh_t + H]       # (H, H) [k,j]
    w_ih_col = packed_ref[ROW_WHH:ROW_WHH + H, lane_wih_col:lane_wih_col + 1]  # (H, 1)
    w_fo_col = packed_ref[ROW_WHH:ROW_WHH + H, lane_wfo_col:lane_wfo_col + 1]  # (H, 1)
    x_col = packed_ref[0:seq, lane_x_col:lane_x_col + 1]                      # (S, 1)

    # Hoisted input projection (INFEATURES == 1 => a pure 2-D outer product),
    # pre-computed in both orientations so no per-step transpose is needed.
    x_proj_cols = w_ih_col * x_row      # (H, S): [h, t] = x[t] * w_ih[h]
    x_proj_rows = x_col * w_ih_row      # (S, H): [t, h] = x[t] * w_ih[h]

    lane_idx = lax.broadcasted_iota(jnp.int32, (1, seq), 1)  # hoisted once

    h_row = jnp.zeros((1, H), jnp.float32)   # h_0 = 0
    h_col = jnp.zeros((H, 1), jnp.float32)
    out_row = jnp.zeros((1, seq), jnp.float32)

    # Fully-unrolled serial recurrence.  Hidden-state orientation alternates
    # row -> column -> row ... so each reduce's output feeds the next step
    # with zero relayouts (even steps lane-reduce, odd steps sublane-reduce).
    for t in range(seq):
        if t % 2 == 0:
            # rec[j] = sum_k h[k] * w_hh[j, k]   (lane reduce -> column)
            rec = jnp.sum(h_row * w_hh, axis=1, keepdims=True)            # (H, 1)
            h_col = jnp.tanh(x_proj_cols[:, t:t + 1] + rec)               # (H, 1)
            out_t = jnp.sum(h_col * w_fo_col, axis=0, keepdims=True)      # (1, 1)
        else:
            # rec[j] = sum_k h[k] * w_hh[j, k]   (sublane reduce via w_hh^T -> row)
            rec = jnp.sum(h_col * w_hh_t, axis=0, keepdims=True)          # (1, H)
            h_row = jnp.tanh(x_proj_rows[t:t + 1, :] + rec)               # (1, H)
            out_t = jnp.sum(h_row * w_fo_row, axis=1, keepdims=True)      # (1, 1)
        # out_t is off the recurrence chain: insert into the lane-dense output
        # row at static lane t with a cheap VPU select (overlaps step t+1).
        out_row = jnp.where(lane_idx == t, out_t, out_row)

    out_ref[...] = out_row.astype(out_ref.dtype)


@jax.jit
def rnn_net_pallas(x, w_ih, w_hh, w_fo):
    """x: (seq, batch, infeatures); weights in PyTorch layout.
    Returns (seq, batch, outputs)."""
    seq, batch, infeat = x.shape
    hidden = w_hh.shape[0]
    outputs = w_fo.shape[0]
    assert batch == 1 and infeat == 1 and outputs == 1, "kernel packs the B=I=O=1 case"
    assert max(ROW_WHH + hidden, seq) <= SLAB_ROWS
    assert max(seq, 2 * hidden + 2) + 1 <= SLAB_LANES

    slab = pack_inputs(x, w_ih, w_hh, w_fo)        # single (8,128) f32 input slab
    vmem = pl.BlockSpec(memory_space=pltpu.MemorySpace.VMEM)
    out_row = pl.pallas_call(
        functools.partial(rnn_kernel, seq=seq, hidden=hidden),
        out_shape=jax.ShapeDtypeStruct((1, seq), x.dtype),   # lane-dense row
        in_specs=[vmem],
        out_specs=vmem,
    )(slab)
    # (1, S) row  ->  (seq, batch, outputs)  (batch = outputs = 1).
    return out_row.reshape(seq, batch, outputs)


def rnn_net_ref(x, w_ih, w_hh, w_fo):
    """Pure-JAX reference of the PyTorch forward."""
    def step(h, x_t):
        h_new = jnp.tanh(x_t @ w_ih.T + h @ w_hh.T)
        return h_new, h_new

    h0 = jnp.zeros((x.shape[1], w_ih.shape[0]), jnp.float32)
    _, hs = lax.scan(step, h0, x)          # (seq, batch, hidden)
    return hs @ w_fo.T                     # (seq, batch, outputs)


if __name__ == "__main__":
    key = jax.random.PRNGKey(0)
    kx, k1, k2, k3 = jax.random.split(key, 4)

    # PyTorch default init: uniform(-1/sqrt(hidden), 1/sqrt(hidden))
    bound = 1.0 / jnp.sqrt(jnp.float32(HIDDEN))
    w_ih = jax.random.uniform(k1, (HIDDEN, INFEATURES), jnp.float32, -bound, bound)
    w_hh = jax.random.uniform(k2, (HIDDEN, HIDDEN), jnp.float32, -bound, bound)
    w_fo = jax.random.uniform(k3, (OUTPUTS, HIDDEN), jnp.float32, -bound, bound)

    x = jax.random.normal(kx, (SEQ, BATCH, INFEATURES), jnp.float32)

    out = rnn_net_pallas(x, w_ih, w_hh, w_fo)
    out = jax.block_until_ready(out)

    ref = rnn_net_ref(x, w_ih, w_hh, w_fo)
    assert out.shape == (SEQ, BATCH, OUTPUTS)
    assert jnp.allclose(out, ref, atol=1e-5, rtol=1e-5), "mismatch vs reference"

    print("KERNEL_OK")
</pallas_src>

<mosaic_0001>
module attributes {stable_mosaic.version = 11 : i64} {
  func.func @rnn_kernel(%arg0: memref<8x128xf32, #tpu.memory_space<vmem>>, %arg1: memref<1x8xf32, #tpu.memory_space<vmem>>) attributes {dimension_semantics = [], scalar_prefetch = 0 : i64, scratch_operands = 0 : i64, tpu.core_type = #tpu.core_type<tc>} {
    %c0 = arith.constant 0 : index
    %c0_0 = arith.constant 0 : index
    %0 = vector.load %arg0[%c0, %c0_0] : memref<8x128xf32, #tpu.memory_space<vmem>>, vector<1x8xf32>
    %c1 = arith.constant 1 : index
    %c0_1 = arith.constant 0 : index
    %1 = vector.load %arg0[%c1, %c0_1] : memref<8x128xf32, #tpu.memory_space<vmem>>, vector<1x3xf32>
    %c2 = arith.constant 2 : index
    %c0_2 = arith.constant 0 : index
    %2 = vector.load %arg0[%c2, %c0_2] : memref<8x128xf32, #tpu.memory_space<vmem>>, vector<1x3xf32>
    %c3 = arith.constant 3 : index
    %c0_3 = arith.constant 0 : index
    %3 = vector.load %arg0[%c3, %c0_3] : memref<8x128xf32, #tpu.memory_space<vmem>>, vector<3x3xf32>
    %c3_4 = arith.constant 3 : index
    %c3_5 = arith.constant 3 : index
    %4 = vector.load %arg0[%c3_4, %c3_5] : memref<8x128xf32, #tpu.memory_space<vmem>>, vector<3x3xf32>
    %c3_6 = arith.constant 3 : index
    %c6 = arith.constant 6 : index
    %5 = vector.load %arg0[%c3_6, %c6] : memref<8x128xf32, #tpu.memory_space<vmem>>, vector<3x1xf32>
    %c3_7 = arith.constant 3 : index
    %c7 = arith.constant 7 : index
    %6 = vector.load %arg0[%c3_7, %c7] : memref<8x128xf32, #tpu.memory_space<vmem>>, vector<3x1xf32>
    %c0_8 = arith.constant 0 : index
    %c8 = arith.constant 8 : index
    %7 = vector.load %arg0[%c0_8, %c8] : memref<8x128xf32, #tpu.memory_space<vmem>>, vector<8x1xf32>
    %8 = vector.broadcast %5 : vector<3x1xf32> to vector<3x8xf32>
    %9 = vector.broadcast %0 : vector<1x8xf32> to vector<3x8xf32>
    %10 = arith.mulf %8, %9 : vector<3x8xf32>
    %11 = vector.broadcast %7 : vector<8x1xf32> to vector<8x3xf32>
    %12 = vector.broadcast %1 : vector<1x3xf32> to vector<8x3xf32>
    %13 = arith.mulf %11, %12 : vector<8x3xf32>
    %14 = tpu.iota {dimensions = array<i32: 1>} : vector<1x8xi32>
    %cst = arith.constant 0.000000e+00 : f32
    %15 = vector.broadcast %cst : f32 to vector<1x3xf32>
    %cst_9 = arith.constant 0.000000e+00 : f32
    %16 = vector.broadcast %cst_9 : f32 to vector<1x8xf32>
    %17 = vector.broadcast %15 : vector<1x3xf32> to vector<3x3xf32>
    %18 = arith.mulf %17, %3 : vector<3x3xf32>
    %cst_10 = arith.constant dense<0.000000e+00> : vector<3xf32>
    %19 = vector.multi_reduction <add>, %18, %cst_10 [1] : vector<3x3xf32> to vector<3xf32>
    %20 = vector.shape_cast %19 : vector<3xf32> to vector<3x1xf32>
    %21 = vector.extract_strided_slice %10 {offsets = [0, 0], sizes = [3, 1], strides = [1, 1]} : vector<3x8xf32> to vector<3x1xf32>
    %22 = arith.addf %21, %20 : vector<3x1xf32>
    %23 = math.tanh %22 : vector<3x1xf32>
    %24 = arith.mulf %23, %6 : vector<3x1xf32>
    %cst_11 = arith.constant dense<0.000000e+00> : vector<1xf32>
    %25 = vector.multi_reduction <add>, %24, %cst_11 [0] : vector<3x1xf32> to vector<1xf32>
    %26 = vector.shape_cast %25 : vector<1xf32> to vector<1x1xf32>
    %c0_i32 = arith.constant 0 : i32
    %27 = vector.broadcast %c0_i32 : i32 to vector<1x8xi32>
    %28 = arith.cmpi eq, %14, %27 : vector<1x8xi32>
    %29 = vector.shape_cast %26 : vector<1x1xf32> to vector<1x1xf32>
    %30 = vector.broadcast %29 : vector<1x1xf32> to vector<1x8xf32>
    %31 = arith.select %28, %30, %16 : vector<1x8xi1>, vector<1x8xf32>
    %32 = vector.broadcast %23 : vector<3x1xf32> to vector<3x3xf32>
    %33 = arith.mulf %32, %4 : vector<3x3xf32>
    %cst_12 = arith.constant dense<0.000000e+00> : vector<3xf32>
    %34 = vector.multi_reduction <add>, %33, %cst_12 [0] : vector<3x3xf32> to vector<3xf32>
    %35 = vector.shape_cast %34 : vector<3xf32> to vector<1x3xf32>
    %36 = vector.extract_strided_slice %13 {offsets = [1, 0], sizes = [1, 3], strides = [1, 1]} : vector<8x3xf32> to vector<1x3xf32>
    %37 = arith.addf %36, %35 : vector<1x3xf32>
    %38 = math.tanh %37 : vector<1x3xf32>
    %39 = arith.mulf %38, %2 : vector<1x3xf32>
    %cst_13 = arith.constant dense<0.000000e+00> : vector<1xf32>
    %40 = vector.multi_reduction <add>, %39, %cst_13 [1] : vector<1x3xf32> to vector<1xf32>
    %41 = vector.shape_cast %40 : vector<1xf32> to vector<1x1xf32>
    %c1_i32 = arith.constant 1 : i32
    %42 = vector.broadcast %c1_i32 : i32 to vector<1x8xi32>
    %43 = arith.cmpi eq, %14, %42 : vector<1x8xi32>
    %44 = vector.shape_cast %41 : vector<1x1xf32> to vector<1x1xf32>
    %45 = vector.broadcast %44 : vector<1x1xf32> to vector<1x8xf32>
    %46 = arith.select %43, %45, %31 : vector<1x8xi1>, vector<1x8xf32>
    %47 = vector.broadcast %38 : vector<1x3xf32> to vector<3x3xf32>
    %48 = arith.mulf %47, %3 : vector<3x3xf32>
    %cst_14 = arith.constant dense<0.000000e+00> : vector<3xf32>
    %49 = vector.multi_reduction <add>, %48, %cst_14 [1] : vector<3x3xf32> to vector<3xf32>
    %50 = vector.shape_cast %49 : vector<3xf32> to vector<3x1xf32>
    %51 = vector.extract_strided_slice %10 {offsets = [0, 2], sizes = [3, 1], strides = [1, 1]} : vector<3x8xf32> to vector<3x1xf32>
    %52 = arith.addf %51, %50 : vector<3x1xf32>
    %53 = math.tanh %52 : vector<3x1xf32>
    %54 = arith.mulf %53, %6 : vector<3x1xf32>
    %cst_15 = arith.constant dense<0.000000e+00> : vector<1xf32>
    %55 = vector.multi_reduction <add>, %54, %cst_15 [0] : vector<3x1xf32> to vector<1xf32>
    %56 = vector.shape_cast %55 : vector<1xf32> to vector<1x1xf32>
    %c2_i32 = arith.constant 2 : i32
    %57 = vector.broadcast %c2_i32 : i32 to vector<1x8xi32>
    %58 = arith.cmpi eq, %14, %57 : vector<1x8xi32>
    %59 = vector.shape_cast %56 : vector<1x1xf32> to vector<1x1xf32>
    %60 = vector.broadcast %59 : vector<1x1xf32> to vector<1x8xf32>
    %61 = arith.select %58, %60, %46 : vector<1x8xi1>, vector<1x8xf32>
    %62 = vector.broadcast %53 : vector<3x1xf32> to vector<3x3xf32>
    %63 = arith.mulf %62, %4 : vector<3x3xf32>
    %cst_16 = arith.constant dense<0.000000e+00> : vector<3xf32>
    %64 = vector.multi_reduction <add>, %63, %cst_16 [0] : vector<3x3xf32> to vector<3xf32>
    %65 = vector.shape_cast %64 : vector<3xf32> to vector<1x3xf32>
    %66 = vector.extract_strided_slice %13 {offsets = [3, 0], sizes = [1, 3], strides = [1, 1]} : vector<8x3xf32> to vector<1x3xf32>
    %67 = arith.addf %66, %65 : vector<1x3xf32>
    %68 = math.tanh %67 : vector<1x3xf32>
    %69 = arith.mulf %68, %2 : vector<1x3xf32>
    %cst_17 = arith.constant dense<0.000000e+00> : vector<1xf32>
    %70 = vector.multi_reduction <add>, %69, %cst_17 [1] : vector<1x3xf32> to vector<1xf32>
    %71 = vector.shape_cast %70 : vector<1xf32> to vector<1x1xf32>
    %c3_i32 = arith.constant 3 : i32
    %72 = vector.broadcast %c3_i32 : i32 to vector<1x8xi32>
    %73 = arith.cmpi eq, %14, %72 : vector<1x8xi32>
    %74 = vector.shape_cast %71 : vector<1x1xf32> to vector<1x1xf32>
    %75 = vector.broadcast %74 : vector<1x1xf32> to vector<1x8xf32>
    %76 = arith.select %73, %75, %61 : vector<1x8xi1>, vector<1x8xf32>
    %77 = vector.broadcast %68 : vector<1x3xf32> to vector<3x3xf32>
    %78 = arith.mulf %77, %3 : vector<3x3xf32>
    %cst_18 = arith.constant dense<0.000000e+00> : vector<3xf32>
    %79 = vector.multi_reduction <add>, %78, %cst_18 [1] : vector<3x3xf32> to vector<3xf32>
    %80 = vector.shape_cast %79 : vector<3xf32> to vector<3x1xf32>
    %81 = vector.extract_strided_slice %10 {offsets = [0, 4], sizes = [3, 1], strides = [1, 1]} : vector<3x8xf32> to vector<3x1xf32>
    %82 = arith.addf %81, %80 : vector<3x1xf32>
    %83 = math.tanh %82 : vector<3x1xf32>
    %84 = arith.mulf %83, %6 : vector<3x1xf32>
    %cst_19 = arith.constant dense<0.000000e+00> : vector<1xf32>
    %85 = vector.multi_reduction <add>, %84, %cst_19 [0] : vector<3x1xf32> to vector<1xf32>
    %86 = vector.shape_cast %85 : vector<1xf32> to vector<1x1xf32>
    %c4_i32 = arith.constant 4 : i32
    %87 = vector.broadcast %c4_i32 : i32 to vector<1x8xi32>
    %88 = arith.cmpi eq, %14, %87 : vector<1x8xi32>
    %89 = vector.shape_cast %86 : vector<1x1xf32> to vector<1x1xf32>
    %90 = vector.broadcast %89 : vector<1x1xf32> to vector<1x8xf32>
    %91 = arith.select %88, %90, %76 : vector<1x8xi1>, vector<1x8xf32>
    %92 = vector.broadcast %83 : vector<3x1xf32> to vector<3x3xf32>
    %93 = arith.mulf %92, %4 : vector<3x3xf32>
    %cst_20 = arith.constant dense<0.000000e+00> : vector<3xf32>
    %94 = vector.multi_reduction <add>, %93, %cst_20 [0] : vector<3x3xf32> to vector<3xf32>
    %95 = vector.shape_cast %94 : vector<3xf32> to vector<1x3xf32>
    %96 = vector.extract_strided_slice %13 {offsets = [5, 0], sizes = [1, 3], strides = [1, 1]} : vector<8x3xf32> to vector<1x3xf32>
    %97 = arith.addf %96, %95 : vector<1x3xf32>
    %98 = math.tanh %97 : vector<1x3xf32>
    %99 = arith.mulf %98, %2 : vector<1x3xf32>
    %cst_21 = arith.constant dense<0.000000e+00> : vector<1xf32>
    %100 = vector.multi_reduction <add>, %99, %cst_21 [1] : vector<1x3xf32> to vector<1xf32>
    %101 = vector.shape_cast %100 : vector<1xf32> to vector<1x1xf32>
    %c5_i32 = arith.constant 5 : i32
    %102 = vector.broadcast %c5_i32 : i32 to vector<1x8xi32>
    %103 = arith.cmpi eq, %14, %102 : vector<1x8xi32>
    %104 = vector.shape_cast %101 : vector<1x1xf32> to vector<1x1xf32>
    %105 = vector.broadcast %104 : vector<1x1xf32> to vector<1x8xf32>
    %106 = arith.select %103, %105, %91 : vector<1x8xi1>, vector<1x8xf32>
    %107 = vector.broadcast %98 : vector<1x3xf32> to vector<3x3xf32>
    %108 = arith.mulf %107, %3 : vector<3x3xf32>
    %cst_22 = arith.constant dense<0.000000e+00> : vector<3xf32>
    %109 = vector.multi_reduction <add>, %108, %cst_22 [1] : vector<3x3xf32> to vector<3xf32>
    %110 = vector.shape_cast %109 : vector<3xf32> to vector<3x1xf32>
    %111 = vector.extract_strided_slice %10 {offsets = [0, 6], sizes = [3, 1], strides = [1, 1]} : vector<3x8xf32> to vector<3x1xf32>
    %112 = arith.addf %111, %110 : vector<3x1xf32>
    %113 = math.tanh %112 : vector<3x1xf32>
    %114 = arith.mulf %113, %6 : vector<3x1xf32>
    %cst_23 = arith.constant dense<0.000000e+00> : vector<1xf32>
    %115 = vector.multi_reduction <add>, %114, %cst_23 [0] : vector<3x1xf32> to vector<1xf32>
    %116 = vector.shape_cast %115 : vector<1xf32> to vector<1x1xf32>
    %c6_i32 = arith.constant 6 : i32
    %117 = vector.broadcast %c6_i32 : i32 to vector<1x8xi32>
    %118 = arith.cmpi eq, %14, %117 : vector<1x8xi32>
    %119 = vector.shape_cast %116 : vector<1x1xf32> to vector<1x1xf32>
    %120 = vector.broadcast %119 : vector<1x1xf32> to vector<1x8xf32>
    %121 = arith.select %118, %120, %106 : vector<1x8xi1>, vector<1x8xf32>
    %122 = vector.broadcast %113 : vector<3x1xf32> to vector<3x3xf32>
    %123 = arith.mulf %122, %4 : vector<3x3xf32>
    %cst_24 = arith.constant dense<0.000000e+00> : vector<3xf32>
    %124 = vector.multi_reduction <add>, %123, %cst_24 [0] : vector<3x3xf32> to vector<3xf32>
    %125 = vector.shape_cast %124 : vector<3xf32> to vector<1x3xf32>
    %126 = vector.extract_strided_slice %13 {offsets = [7, 0], sizes = [1, 3], strides = [1, 1]} : vector<8x3xf32> to vector<1x3xf32>
    %127 = arith.addf %126, %125 : vector<1x3xf32>
    %128 = math.tanh %127 : vector<1x3xf32>
    %129 = arith.mulf %128, %2 : vector<1x3xf32>
    %cst_25 = arith.constant dense<0.000000e+00> : vector<1xf32>
    %130 = vector.multi_reduction <add>, %129, %cst_25 [1] : vector<1x3xf32> to vector<1xf32>
    %131 = vector.shape_cast %130 : vector<1xf32> to vector<1x1xf32>
    %c7_i32 = arith.constant 7 : i32
    %132 = vector.broadcast %c7_i32 : i32 to vector<1x8xi32>
    %133 = arith.cmpi eq, %14, %132 : vector<1x8xi32>
    %134 = vector.shape_cast %131 : vector<1x1xf32> to vector<1x1xf32>
    %135 = vector.broadcast %134 : vector<1x1xf32> to vector<1x8xf32>
    %136 = arith.select %133, %135, %121 : vector<1x8xi1>, vector<1x8xf32>
    %c0_26 = arith.constant 0 : index
    %c0_27 = arith.constant 0 : index
    %137 = vector.load %arg1[%c0_26, %c0_27] : memref<1x8xf32, #tpu.memory_space<vmem>>, vector<1x8xf32>
    tpu.vector_store %arg1[%c0_26, %c0_27], %136 {strides = array<i32>} : memref<1x8xf32, #tpu.memory_space<vmem>>, vector<1x8xf32>,
    return
  }
}

</mosaic_0001>

<llo_original>
// kernel: rnn_net_pallas.1
$region0: #{rnn_net_pallas.1}
  #allocation0 [shape = 'u32[]', space=smem, size = 0x4, offset = 0x4, fixed_abs, tag = 'smem constant byte address 0x4 - core index']
  #allocation1 [shape = 'u32[144,128]{1,0:T(1,128)}', space=vmem, size = 0x12000, scoped, tag = 'internal scratch']
  %s0 = inlined_call_operand.vmem [shape: f32[8,128], index: 0, kind: input, shape index: {}]
  %s1 = inlined_call_operand.hbm [shape: f32[1,8], index: 1, kind: output, shape index: {}]
  %s2 = sld [smem:[#allocation0]]
  $region14: #{rnn_net_pallas.1} parent=0
    _
  %s4 = ssub.s32 1, %s2
  %s5 = scalar_select 0, %s4, %s2
  $region1: #{rnn_net_pallas.1} parent=0
    #allocation2 [shape = 'u8[512]{0}', space=vmem, size = 0x400, scoped, tag = 'output window, operand 0, single buffered']
    #allocation3 [shape = 's32[1]{0}', space=sflag, size = 0x4, scoped, tag = 'scoped memory for rnn_net_pallas.1']
    %6 = vsyncpa [#allocation3], 0
    // Predicated region
    $region2: #{rnn_net_pallas.1} parent=1 // pred_check
      _
    $region3: #{rnn_net_pallas.1} parent=1 // pred_check_branch
      %8 = sbr.rel (0) target = $region5
    $region4: #{rnn_net_pallas.1} parent=1 // pred_region
      _
    $region5: #{rnn_net_pallas.1} parent=1 // pred_fallthru
      _
    %v9 = vld [vmem:[%s0] sm:$0x1]
    %v10 = vld [vmem:[%s0 + $0x1] sm:$0x1]
    %v11 = vld [vmem:[%s0 + $0x2] sm:$0x1]
    %v12 = vld [vmem:[%s0 + $0x3] sm:$0x7]
    %v13 = vld [vmem:[%s0] sm:$0xff]
    %15 = vset.pattern.permute.xlu0 6
    %16 = vperm.xlu0 %15, %v12
    %v17 = vpop.permute.xlu0 %16
    %v19 = vlaneseq
    %v20 = vshrl.u32 %v19, 7
    %v21 = vsub.s32 0, %v20
    %v22 = vrot.slane %v9, %v21
    %v23 = vmul.f32 %v17, %v22
    %25 = vset.pattern.permute.xlu0 8
    %26 = vperm.xlu0 %25, %v13
    %v27 = vpop.permute.xlu0 %26
    %v29 = vlaneseq
    %v30 = vshrl.u32 %v29, 7
    %v31 = vsub.s32 0, %v30
    %v32 = vrot.slane %v10, %v31
    %v33 = vmul.f32 %v27, %v32
    %v34 = vlaneseq
    %v35 = vand.u32 %v34, 127
    %v36 = vmul.f32 %v12, 0.0
    %vm37 = vcmask 18432
    %v38 = vsel %vm37, %v36, 0.0
    %39 = vadd.xlane.f32.xlu0 %v38
    %v40 = vpop.xlane.xlu0 %39
    %v41 = vadd.f32 %v23, %v40
    %v42 = vtanh.pop %v41
    %43 = vrot.lane.b32.xlu0 %v12, 121
    %v44 = vpop.permute.xlu0 %43
    %v46 = vmul.f32 %v42, %v44
    %vm47 = vcmask 2048
    %v48 = vsel %vm47, %v46, 0.0
    %v49 = vrot.slane %v48, 4
    %v50 = vadd.f32 %v48, %v49
    %v51 = vrot.slane %v50, 2
    %v52 = vadd.f32 %v50, %v51
    %v53 = vrot.slane %v52, 1
    %v54 = vadd.f32 %v52, %v53
    %vm55 = vcmp.eq.s32.totalorder %v35, 0
    %57 = vset.pattern.permute.xlu0 0
    %58 = vperm.xlu0 %57, %v54
    %v59 = vpop.permute.xlu0 %58
    %v61 = vsel %vm55, %v59, 0.0
    %63 = vset.pattern.permute.xlu0 0
    %64 = vperm.xlu0 %63, %v42
    %v65 = vpop.permute.xlu0 %64
    %v67 = vmul.f32 %v65, %v12
    %vm68 = vcmask 43032
    %v69 = vsel %vm68, %v67, 0.0
    %v70 = vrot.slane %v69, 4
    %v71 = vadd.f32 %v69, %v70
    %v72 = vrot.slane %v71, 2
    %v73 = vadd.f32 %v71, %v72
    %v74 = vrot.slane %v73, 1
    %v75 = vadd.f32 %v73, %v74
    %77 = vrot.lane.b32.xlu0 %v75, 125
    %v78 = vpop.permute.xlu0 %77
    %v80 = vadd.f32 %v33, %v78
    %v81 = vtanh.pop %v80
    %v83 = vrot.slane %v11, 7
    %v85 = vmul.f32 %v81, %v83
    %vm86 = vcmask 17409
    %v87 = vsel %vm86, %v85, 0.0
    %88 = vadd.xlane.f32.xlu0 %v87
    %v89 = vpop.xlane.xlu0 %88
    %vm90 = vcmp.eq.s32.totalorder %v35, 1
    %v91 = vsel %vm90, %v89, %v61
    %v92 = vlaneseq
    %v93 = vshrl.u32 %v92, 7
    %v94 = vsub.s32 1, %v93
    %v95 = vrot.slane %v81, %v94
    %v96 = vmul.f32 %v95, %v12
    %v97 = vsel %vm37, %v96, 0.0
    %98 = vadd.xlane.f32.xlu0 %v97
    %v99 = vpop.xlane.xlu0 %98
    %v100 = vadd.f32 %v23, %v99
    %v101 = vtanh.pop %v100
    %102 = vrot.lane.b32.xlu0 %v12, 123
    %v103 = vpop.permute.xlu0 %102
    %v105 = vmul.f32 %v101, %v103
    %vm106 = vcmask 18448
    %v107 = vsel %vm106, %v105, 0.0
    %v108 = vrot.slane %v107, 4
    %v109 = vadd.f32 %v107, %v108
    %v110 = vrot.slane %v109, 2
    %v111 = vadd.f32 %v109, %v110
    %v112 = vrot.slane %v111, 1
    %v113 = vadd.f32 %v111, %v112
    %vm114 = vcmp.eq.s32.totalorder %v35, 2
    %116 = vset.pattern.permute.xlu0 2
    %117 = vperm.xlu0 %116, %v113
    %v118 = vpop.permute.xlu0 %117
    %v120 = vsel %vm114, %v118, %v91
    %122 = vset.pattern.permute.xlu0 2
    %123 = vperm.xlu0 %122, %v101
    %v124 = vpop.permute.xlu0 %123
    %v126 = vmul.f32 %v124, %v12
    %v127 = vsel %vm68, %v126, 0.0
    %v128 = vrot.slane %v127, 4
    %v129 = vadd.f32 %v127, %v128
    %v130 = vrot.slane %v129, 2
    %v131 = vadd.f32 %v129, %v130
    %v132 = vrot.slane %v131, 1
    %v133 = vadd.f32 %v131, %v132
    %135 = vrot.lane.b32.xlu0 %v133, 125
    %v136 = vpop.permute.xlu0 %135
    %v138 = vadd.f32 %v33, %v136
    %v139 = vtanh.pop %v138
    %v140 = vrot.slane %v11, 5
    %v142 = vmul.f32 %v139, %v140
    %vm143 = vcmask 19459
    %v144 = vsel %vm143, %v142, 0.0
    %145 = vadd.xlane.f32.xlu0 %v144
    %v146 = vpop.xlane.xlu0 %145
    %vm147 = vcmp.eq.s32.totalorder %v35, 3
    %v149 = vrot.slane %v120, 6
    %v151 = vsel %vm147, %v146, %v149
    %v152 = vlaneseq
    %v153 = vshrl.u32 %v152, 7
    %v154 = vsub.s32 3, %v153
    %v155 = vrot.slane %v139, %v154
    %v156 = vmul.f32 %v155, %v12
    %v157 = vsel %vm37, %v156, 0.0
    %158 = vadd.xlane.f32.xlu0 %v157
    %v159 = vpop.xlane.xlu0 %158
    %v160 = vadd.f32 %v23, %v159
    %v161 = vtanh.pop %v160
    %162 = vrot.lane.b32.xlu0 %v12, 125
    %v163 = vpop.permute.xlu0 %162
    %v165 = vmul.f32 %v161, %v163
    %vm166 = vcmask 34848
    %v167 = vsel %vm166, %v165, 0.0
    %v168 = vrot.slane %v167, 4
    %v169 = vadd.f32 %v167, %v168
    %v170 = vrot.slane %v169, 2
    %v171 = vadd.f32 %v169, %v170
    %v172 = vrot.slane %v171, 1
    %v173 = vadd.f32 %v171, %v172
    %vm174 = vcmp.eq.s32.totalorder %v35, 4
    %176 = vset.pattern.permute.xlu0 4
    %177 = vperm.xlu0 %176, %v173
    %v178 = vpop.permute.xlu0 %177
    %v180 = vsel %vm174, %v178, %v151
    %182 = vset.pattern.permute.xlu0 4
    %183 = vperm.xlu0 %182, %v161
    %v184 = vpop.permute.xlu0 %183
    %v186 = vmul.f32 %v184, %v12
    %v187 = vsel %vm68, %v186, 0.0
    %v188 = vrot.slane %v187, 4
    %v189 = vadd.f32 %v187, %v188
    %v190 = vrot.slane %v189, 2
    %v191 = vadd.f32 %v189, %v190
    %v192 = vrot.slane %v191, 1
    %v193 = vadd.f32 %v191, %v192
    %195 = vrot.lane.b32.xlu0 %v193, 125
    %v196 = vpop.permute.xlu0 %195
    %v198 = vadd.f32 %v33, %v196
    %v199 = vtanh.pop %v198
    %v200 = vrot.slane %v11, 3
    %v202 = vmul.f32 %v199, %v200
    %vm203 = vcmask 21509
    %v204 = vsel %vm203, %v202, 0.0
    %205 = vadd.xlane.f32.xlu0 %v204
    %v206 = vpop.xlane.xlu0 %205
    %vm207 = vcmp.eq.s32.totalorder %v35, 5
    %v209 = vrot.slane %v180, 6
    %v211 = vsel %vm207, %v206, %v209
    %v212 = vlaneseq
    %v213 = vshrl.u32 %v212, 7
    %v214 = vsub.s32 5, %v213
    %v215 = vrot.slane %v199, %v214
    %v216 = vmul.f32 %v215, %v12
    %v217 = vsel %vm37, %v216, 0.0
    %218 = vadd.xlane.f32.xlu0 %v217
    %v219 = vpop.xlane.xlu0 %218
    %v220 = vadd.f32 %v23, %v219
    %v221 = vtanh.pop %v220
    %222 = vrot.lane.b32.xlu0 %v12, 127
    %v223 = vpop.permute.xlu0 %222
    %v225 = vmul.f32 %v221, %v223
    %vm226 = vcmask 51248
    %v227 = vsel %vm226, %v225, 0.0
    %v228 = vrot.slane %v227, 4
    %v229 = vadd.f32 %v227, %v228
    %v230 = vrot.slane %v229, 2
    %v231 = vadd.f32 %v229, %v230
    %v232 = vrot.slane %v231, 1
    %v233 = vadd.f32 %v231, %v232
    %vm234 = vcmp.eq.s32.totalorder %v35, 6
    %236 = vset.pattern.permute.xlu0 6
    %237 = vperm.xlu0 %236, %v233
    %v238 = vpop.permute.xlu0 %237
    %v240 = vsel %vm234, %v238, %v211
    %242 = vset.pattern.permute.xlu0 6
    %243 = vperm.xlu0 %242, %v221
    %v244 = vpop.permute.xlu0 %243
    %v246 = vmul.f32 %v244, %v12
    %v247 = vsel %vm68, %v246, 0.0
    %v248 = vrot.slane %v247, 4
    %v249 = vadd.f32 %v247, %v248
    %v250 = vrot.slane %v249, 2
    %v251 = vadd.f32 %v249, %v250
    %v252 = vrot.slane %v251, 1
    %v253 = vadd.f32 %v251, %v252
    %255 = vrot.lane.b32.xlu0 %v253, 125
    %v256 = vpop.permute.xlu0 %255
    %v258 = vadd.f32 %v33, %v256
    %v259 = vtanh.pop %v258
    %v260 = vrot.slane %v11, 1
    %v262 = vmul.f32 %v259, %v260
    %vm263 = vcmask 23559
    %v264 = vsel %vm263, %v262, 0.0
    %265 = vadd.xlane.f32.xlu0 %v264
    %v266 = vpop.xlane.xlu0 %265
    %vm267 = vcmp.eq.s32.totalorder %v35, 7
    %v269 = vrot.slane %v240, 6
    %v271 = vsel %vm267, %v266, %v269
    %vm272 = vcmask 64519
    %273 = vst.msk [vmem:[#allocation2 - $0x7] sm:$0x80] %vm272, %v271
    // Predicated region
    $region6: #{rnn_net_pallas.1} parent=1 // pred_check
      _
    $region7: #{rnn_net_pallas.1} parent=1 // pred_check_branch
      %275 = sbr.rel (0) target = $region9
    $region8: #{rnn_net_pallas.1} parent=1 // pred_region
      %s277 = ssub.s32 16, 16
      %278 = vsyncadd [#allocation3], %s277
      %s280 = sshll.u32 [#allocation2], 4
      %s281 = int_to_ptr.vmem [resolvable:$true] %s280
      %283 = dma.vmem_to_hbm [thread:$0]  %s281, 16, %s1, [#allocation3]
    $region9: #{rnn_net_pallas.1} parent=1 // pred_fallthru
      _
    // Predicated region
    $region10: #{rnn_net_pallas.1} parent=1 // pred_check
      _
    $region11: #{rnn_net_pallas.1} parent=1 // pred_check_branch
      %285 = sbr.rel (0) target = $region13
    $region12: #{rnn_net_pallas.1} parent=1 // pred_region
      %286 = dma.done [#allocation3], 16
    $region13: #{rnn_net_pallas.1} parent=1 // pred_fallthru
      _
    %287 = vsyncpa [#allocation3], 1

</llo_original>
